<compile_context>
chip_gen: v7x
topology: tpu7x:2x2x1
jax: 0.10.0
libtpu: 0.0.40
codegen_flags: <defaults>
</compile_context>

<pallas_src>
import functools

import numpy as np
import jax
import jax.numpy as jnp
from jax import lax
from jax.experimental import pallas as pl
from jax.experimental.pallas import tpu as pltpu

_EPSILON = 1e-7
# cifar10 normalization constants (matches _get_normalize for opt.dataset == 'cifar10')
_MEAN = (0.4914, 0.4822, 0.4465)
_STD = (0.247, 0.243, 0.261)


def _round_up(a, b):
    return ((a + b - 1) // b) * b


def _fused_kernel(x_ref, mask_t_ref, pat_t_ref, mean_ref, istd_ref, w_ref, b_ref,
                  o_ref, *, inv_scale):
    """Fused: raw mask/pattern -> normalize -> blend -> linear head, one N-tile.

    x_ref:      (TN, K)     input image rows, lane-major, K = C*HW
    mask_t_ref: (1, K)      mask_tanh tiled across the C channel slabs (resident)
    pat_t_ref:  (1, K)      pattern_tanh flattened lane-major            (resident)
    mean_ref:   (1, K)      per-lane channel mean                        (resident)
    istd_ref:   (1, K)      per-lane 1/std                               (resident)
    w_ref:      (K, NCpad)  stand-in classifier weights, bf16            (resident)
    b_ref:      (1, NCpad)  stand-in classifier bias, f32                (resident)
    o_ref:      (TN, NCpad) padded logits
    """
    # Grid-invariant (1, K) preamble. tanh goes to the EUP (free slot); the few
    # VALU ops on a single (1, K) row are negligible next to the (TN, K) block.
    mask = jnp.tanh(mask_t_ref[...]) * inv_scale + 0.5        # get_raw_mask
    pattern = jnp.tanh(pat_t_ref[...]) * inv_scale + 0.5      # get_raw_pattern
    pattern = (pattern - mean_ref[...]) * istd_ref[...]       # Normalize()

    # Hoisted blend constants: blended = x * a + b  (2 VPU ops/elem on (TN, K)).
    a_row = 1.0 - mask                                        # (1, K)
    b_row = mask * pattern                                    # (1, K)
    blended = x_ref[...] * a_row + b_row                      # (TN, K)

    # TODO(synk): original self.classifier is an arbitrary checkpoint-loaded
    # conv net (generate_cls_model + load_state_dict); replaced here by a
    # deterministic stand-in linear head on the flattened blended input.
    # bf16 MXU operands, f32 accumulation.
    o_ref[...] = (
        jnp.dot(blended.astype(jnp.bfloat16), w_ref[...],
                preferred_element_type=jnp.float32)
        + b_ref[...]
    )


def regression_model_forward(x_nchw, mask_tanh, pattern_tanh, cls_w, cls_b,
                             *, tn_cap=256):
    """x_nchw: (N, C, H, W) f32; mask_tanh: (1, H, W); pattern_tanh: (C, H, W);
    cls_w: (C*H*W, num_classes); cls_b: (1, num_classes) or (num_classes,).

    tn_cap=256 fits v5e's 16 MiB scoped-VMEM default for K=3072; on v6e/v7x it
    can be raised to 512 (with dimension_semantics=("parallel",) already set,
    v7x shards the batch blocks across its 2 TensorCores).
    """
    N, C, H, W = x_nchw.shape
    HW = H * W
    K = C * HW
    num_classes = cls_w.shape[-1]
    nc_pad = max(128, pl.cdiv(num_classes, 128) * 128)   # keep at 128 for 10 classes

    # Batch tiling: TN multiple of 8, batch padded to a multiple of TN so every
    # block is full (unmasked lane-dense stores, no tail masking).
    tn = min(tn_cap, _round_up(N, 8))
    n_pad = _round_up(N, tn)
    grid_n = n_pad // tn

    # Lane-major slabs: last dim K = C*HW (multiple of 128 here -> lane-dense).
    x = jnp.zeros((n_pad, K), jnp.float32).at[:N].set(
        x_nchw.reshape(N, K).astype(jnp.float32))
    # mask is shared across channels: tile the (1, HW) row across the C slabs
    # (tanh(tile(t)) == tile(tanh(t)), pure layout plumbing).
    mask_t_row = jnp.tile(mask_tanh.reshape(1, HW).astype(jnp.float32), (1, C))
    pat_t_row = pattern_tanh.reshape(1, K).astype(jnp.float32)

    # Per-lane channel mean / 1/std rows, built on host (no in-kernel int-div /
    # where chain, no device-side compute).
    mean_row = jnp.asarray(
        np.repeat(np.asarray(_MEAN[:C], np.float32), HW).reshape(1, K))
    istd_row = jnp.asarray(
        (1.0 / np.repeat(np.asarray(_STD[:C], np.float32), HW)).reshape(1, K))

    # Classifier head: pad to a 128-wide (lane-dense) output once, pre-cast W to
    # bf16 so the kernel never re-casts the resident (K, 128) block per step.
    w_pad = (jnp.zeros((K, nc_pad), jnp.float32)
             .at[:, :num_classes].set(cls_w.astype(jnp.float32))
             .astype(jnp.bfloat16))
    b_pad = jnp.zeros((1, nc_pad), jnp.float32).at[:, :num_classes].set(
        cls_b.reshape(1, num_classes).astype(jnp.float32))

    kernel = functools.partial(_fused_kernel, inv_scale=1.0 / (2.0 + _EPSILON))

    logits_pad = pl.pallas_call(
        kernel,
        out_shape=jax.ShapeDtypeStruct((n_pad, nc_pad), jnp.float32),
        grid_spec=pltpu.PrefetchScalarGridSpec(
            num_scalar_prefetch=0,
            grid=(grid_n,),
            in_specs=[
                pl.BlockSpec((tn, K), lambda i: (i, 0)),        # x (pipelined)
                pl.BlockSpec((1, K), lambda i: (0, 0)),         # mask_tanh (resident)
                pl.BlockSpec((1, K), lambda i: (0, 0)),         # pattern_tanh
                pl.BlockSpec((1, K), lambda i: (0, 0)),         # per-lane mean
                pl.BlockSpec((1, K), lambda i: (0, 0)),         # per-lane 1/std
                pl.BlockSpec((K, nc_pad), lambda i: (0, 0)),    # classifier W (bf16)
                pl.BlockSpec((1, nc_pad), lambda i: (0, 0)),    # classifier b
            ],
            out_specs=pl.BlockSpec((tn, nc_pad), lambda i: (i, 0)),
        ),
        compiler_params=pltpu.CompilerParams(
            dimension_semantics=("parallel",)),   # shards batch blocks across v7x TCs
    )(x, mask_t_row, pat_t_row, mean_row, istd_row, w_pad, b_pad)

    return logits_pad[:N, :num_classes]


def _reference_forward(x_nchw, mask_tanh, pattern_tanh, cls_w, cls_b):
    """Pure-JAX reference mirroring the PyTorch forward (f32, HIGHEST precision)."""
    N, C, H, W = x_nchw.shape
    mask = jnp.tanh(mask_tanh) / (2.0 + _EPSILON) + 0.5                 # (1,H,W)
    pattern = jnp.tanh(pattern_tanh) / (2.0 + _EPSILON) + 0.5           # (C,H,W)
    mean = jnp.asarray(_MEAN[:C], jnp.float32).reshape(C, 1, 1)
    std = jnp.asarray(_STD[:C], jnp.float32).reshape(C, 1, 1)
    pattern = (pattern - mean) / std
    blended = (1.0 - mask)[None] * x_nchw + mask[None] * pattern[None]  # (N,C,H,W)
    flat = blended.reshape(N, C * H * W)
    return jnp.dot(flat, cls_w, precision=lax.Precision.HIGHEST) + cls_b.reshape(1, -1)


if __name__ == "__main__":
    key = jax.random.PRNGKey(0)
    N, C, H, W = 2, 3, 16, 16      # small cifar10-like shapes (3 channels)
    num_classes = 10

    k1, k2, k3, k4, k5 = jax.random.split(key, 5)
    x = jax.random.normal(k1, (N, C, H, W), jnp.float32)
    init_mask = 0.1 * jax.random.normal(k2, (1, H, W), jnp.float32)       # mask_tanh
    init_pattern = 0.1 * jax.random.normal(k3, (C, H, W), jnp.float32)    # pattern_tanh
    cls_w = 0.02 * jax.random.normal(k4, (C * H * W, num_classes), jnp.float32)
    cls_b = 0.02 * jax.random.normal(k5, (1, num_classes), jnp.float32)

    out = regression_model_forward(x, init_mask, init_pattern, cls_w, cls_b)
    jax.block_until_ready(out)
    assert out.shape == (N, num_classes)

    ref = _reference_forward(x, init_mask, init_pattern, cls_w, cls_b)
    # Tolerance accounts for intentional bf16 MXU operands vs f32 HIGHEST reference.
    assert jnp.allclose(out, ref, rtol=5e-3, atol=5e-3), (
        float(jnp.max(jnp.abs(out - ref))))

    print("KERNEL_OK")
</pallas_src>

<mosaic_0001>
module attributes {stable_mosaic.version = 11 : i64} {
  func.func @_fused_kernel(%arg0: i32, %arg1: memref<8x768xf32, #tpu.memory_space<vmem>>, %arg2: memref<1x768xf32, #tpu.memory_space<vmem>>, %arg3: memref<1x768xf32, #tpu.memory_space<vmem>>, %arg4: memref<1x768xf32, #tpu.memory_space<vmem>>, %arg5: memref<1x768xf32, #tpu.memory_space<vmem>>, %arg6: memref<768x128xbf16, #tpu.memory_space<vmem>>, %arg7: memref<1x128xf32, #tpu.memory_space<vmem>>, %arg8: memref<8x128xf32, #tpu.memory_space<vmem>>) attributes {dimension_semantics = [#tpu.dimension_semantics<parallel>], iteration_bounds = array<i64: 1>, scalar_prefetch = 0 : i64, scratch_operands = 0 : i64, tpu.core_type = #tpu.core_type<tc>, window_params = [{transform_indices = @transform_0, window_bounds = array<i64: 8, 768>}, {pipeline_mode = #tpu.pipeline_mode<synchronous>, transform_indices = @transform_1, window_bounds = array<i64: 1, 768>}, {pipeline_mode = #tpu.pipeline_mode<synchronous>, transform_indices = @transform_2, window_bounds = array<i64: 1, 768>}, {pipeline_mode = #tpu.pipeline_mode<synchronous>, transform_indices = @transform_3, window_bounds = array<i64: 1, 768>}, {pipeline_mode = #tpu.pipeline_mode<synchronous>, transform_indices = @transform_4, window_bounds = array<i64: 1, 768>}, {pipeline_mode = #tpu.pipeline_mode<synchronous>, transform_indices = @transform_5, window_bounds = array<i64: 768, 128>}, {pipeline_mode = #tpu.pipeline_mode<synchronous>, transform_indices = @transform_6, window_bounds = array<i64: 1, 128>}, {transform_indices = @transform_7, window_bounds = array<i64: 8, 128>}]} {
    %c0 = arith.constant 0 : index
    %c0_0 = arith.constant 0 : index
    %0 = vector.load %arg2[%c0, %c0_0] : memref<1x768xf32, #tpu.memory_space<vmem>>, vector<1x768xf32>
    %1 = math.tanh %0 : vector<1x768xf32>
    %cst = arith.constant 0.49999997 : f32
    %2 = vector.broadcast %cst : f32 to vector<1x768xf32>
    %3 = arith.mulf %1, %2 : vector<1x768xf32>
    %cst_1 = arith.constant 5.000000e-01 : f32
    %4 = vector.broadcast %cst_1 : f32 to vector<1x768xf32>
    %5 = arith.addf %3, %4 : vector<1x768xf32>
    %c0_2 = arith.constant 0 : index
    %c0_3 = arith.constant 0 : index
    %6 = vector.load %arg3[%c0_2, %c0_3] : memref<1x768xf32, #tpu.memory_space<vmem>>, vector<1x768xf32>
    %7 = math.tanh %6 : vector<1x768xf32>
    %cst_4 = arith.constant 0.49999997 : f32
    %8 = vector.broadcast %cst_4 : f32 to vector<1x768xf32>
    %9 = arith.mulf %7, %8 : vector<1x768xf32>
    %cst_5 = arith.constant 5.000000e-01 : f32
    %10 = vector.broadcast %cst_5 : f32 to vector<1x768xf32>
    %11 = arith.addf %9, %10 : vector<1x768xf32>
    %c0_6 = arith.constant 0 : index
    %c0_7 = arith.constant 0 : index
    %12 = vector.load %arg4[%c0_6, %c0_7] : memref<1x768xf32, #tpu.memory_space<vmem>>, vector<1x768xf32>
    %13 = arith.subf %11, %12 : vector<1x768xf32>
    %c0_8 = arith.constant 0 : index
    %c0_9 = arith.constant 0 : index
    %14 = vector.load %arg5[%c0_8, %c0_9] : memref<1x768xf32, #tpu.memory_space<vmem>>, vector<1x768xf32>
    %15 = arith.mulf %13, %14 : vector<1x768xf32>
    %cst_10 = arith.constant 1.000000e+00 : f32
    %16 = vector.broadcast %cst_10 : f32 to vector<1x768xf32>
    %17 = arith.subf %16, %5 : vector<1x768xf32>
    %18 = arith.mulf %5, %15 : vector<1x768xf32>
    %c0_11 = arith.constant 0 : index
    %c0_12 = arith.constant 0 : index
    %19 = vector.load %arg1[%c0_11, %c0_12] : memref<8x768xf32, #tpu.memory_space<vmem>>, vector<8x768xf32>
    %20 = vector.broadcast %17 : vector<1x768xf32> to vector<8x768xf32>
    %21 = arith.mulf %19, %20 : vector<8x768xf32>
    %22 = vector.broadcast %18 : vector<1x768xf32> to vector<8x768xf32>
    %23 = arith.addf %21, %22 : vector<8x768xf32>
    %24 = arith.truncf %23 : vector<8x768xf32> to vector<8x768xbf16>
    %c0_13 = arith.constant 0 : index
    %c0_14 = arith.constant 0 : index
    %25 = vector.load %arg6[%c0_13, %c0_14] : memref<768x128xbf16, #tpu.memory_space<vmem>>, vector<768x128xbf16>
    %cst_15 = arith.constant dense<0.000000e+00> : vector<8x128xf32>
    %26 = tpu.matmul %24, %25, %cst_15 {dimension_numbers = #tpu.dot_dimension_numbers<[1], [0], [0], [1], [0, 0, 1, 1], [], []>} : vector<8x768xbf16>, vector<768x128xbf16>, vector<8x128xf32> -> vector<8x128xf32>
    %c0_16 = arith.constant 0 : index
    %c0_17 = arith.constant 0 : index
    %27 = vector.load %arg7[%c0_16, %c0_17] : memref<1x128xf32, #tpu.memory_space<vmem>>, vector<1x128xf32>
    %28 = vector.broadcast %27 : vector<1x128xf32> to vector<8x128xf32>
    %29 = arith.addf %26, %28 : vector<8x128xf32>
    %c0_18 = arith.constant 0 : index
    %c0_19 = arith.constant 0 : index
    %30 = vector.load %arg8[%c0_18, %c0_19] : memref<8x128xf32, #tpu.memory_space<vmem>>, vector<8x128xf32>
    tpu.vector_store %arg8[%c0_18, %c0_19], %29 {strides = array<i32>} : memref<8x128xf32, #tpu.memory_space<vmem>>, vector<8x128xf32>,
    return
  }
  func.func @transform_0(%arg0: i32) -> (i32, i32) {
    %c0_i32 = arith.constant 0 : i32
    %c0_i32_0 = arith.constant 0 : i32
    return %arg0, %c0_i32 : i32, i32
  }
  func.func @transform_1(%arg0: i32) -> (i32, i32) {
    %c0_i32 = arith.constant 0 : i32
    %c0_i32_0 = arith.constant 0 : i32
    %c0_i32_1 = arith.constant 0 : i32
    return %c0_i32, %c0_i32_0 : i32, i32
  }
  func.func @transform_2(%arg0: i32) -> (i32, i32) {
    %c0_i32 = arith.constant 0 : i32
    %c0_i32_0 = arith.constant 0 : i32
    %c0_i32_1 = arith.constant 0 : i32
    return %c0_i32, %c0_i32_0 : i32, i32
  }
  func.func @transform_3(%arg0: i32) -> (i32, i32) {
    %c0_i32 = arith.constant 0 : i32
    %c0_i32_0 = arith.constant 0 : i32
    %c0_i32_1 = arith.constant 0 : i32
    return %c0_i32, %c0_i32_0 : i32, i32
  }
  func.func @transform_4(%arg0: i32) -> (i32, i32) {
    %c0_i32 = arith.constant 0 : i32
    %c0_i32_0 = arith.constant 0 : i32
    %c0_i32_1 = arith.constant 0 : i32
    return %c0_i32, %c0_i32_0 : i32, i32
  }
  func.func @transform_5(%arg0: i32) -> (i32, i32) {
    %c0_i32 = arith.constant 0 : i32
    %c0_i32_0 = arith.constant 0 : i32
    %c0_i32_1 = arith.constant 0 : i32
    return %c0_i32, %c0_i32_0 : i32, i32
  }
  func.func @transform_6(%arg0: i32) -> (i32, i32) {
    %c0_i32 = arith.constant 0 : i32
    %c0_i32_0 = arith.constant 0 : i32
    %c0_i32_1 = arith.constant 0 : i32
    return %c0_i32, %c0_i32_0 : i32, i32
  }
  func.func @transform_7(%arg0: i32) -> (i32, i32) {
    %c0_i32 = arith.constant 0 : i32
    %c0_i32_0 = arith.constant 0 : i32
    return %arg0, %c0_i32 : i32, i32
  }
}

</mosaic_0001>

<llo_original>
// kernel: tpu_custom_call.1
$region0: #{tpu_custom_call.1}
  #allocation0 [shape = 'u32[]', space=smem, size = 0x4, offset = 0x4, fixed_abs, tag = 'smem constant byte address 0x4 - core index']
  #allocation1 [shape = 'u32[144,128]{1,0:T(1,128)}', space=vmem, size = 0x12000, scoped, tag = 'internal scratch']
  %s0 = inlined_call_operand.hbm [shape: f32[8,768], index: 0, kind: input, shape index: {}]
  %s1 = inlined_call_operand.hbm [shape: f32[1,768], index: 1, kind: input, shape index: {}]
  %s2 = inlined_call_operand.vmem [shape: f32[1,768], index: 2, kind: input, shape index: {}]
  %s3 = inlined_call_operand.hbm [shape: f32[1,768], index: 3, kind: input, shape index: {}]
  %s4 = inlined_call_operand.vmem [shape: f32[1,768], index: 4, kind: input, shape index: {}]
  %s5 = inlined_call_operand.hbm [shape: bf16[768,128], index: 5, kind: input, shape index: {}]
  %s6 = inlined_call_operand.vmem [shape: f32[1,128], index: 6, kind: input, shape index: {}]
  %s7 = inlined_call_operand.hbm [shape: f32[8,128], index: 7, kind: output, shape index: {}]
  %s8 = sld [smem:[#allocation0]]
  $region54: #{tpu_custom_call.1} parent=0
    _
  %s10 = ssub.s32 1, %s8
  %s11 = scalar_select 0, %s10, %s8
  $region1: #{tpu_custom_call.1} parent=0
    #allocation2 [shape = 'u8[24576]{0}', space=vmem, size = 0x6000, scoped, tag = 'input window, operand 0, single buffered']
    #allocation3 [shape = 's32[1]{0}', space=sflag, size = 0x4, scoped, tag = 'scoped memory for tpu_custom_call.1']
    #allocation4 [shape = 's32[1]{0}', space=sflag, size = 0x4, scoped, tag = 'scoped memory for tpu_custom_call.1']
    #allocation5 [shape = 'u8[3072]{0}', space=vmem, size = 0xc00, scoped, tag = 'input window, operand 1, single buffered']
    #allocation6 [shape = 's32[1]{0}', space=sflag, size = 0x4, scoped, tag = 'scoped memory for tpu_custom_call.1']
    #allocation7 [shape = 'u8[3072]{0}', space=vmem, size = 0xc00, scoped, tag = 'input window, operand 3, single buffered']
    #allocation8 [shape = 'u8[196608]{0}', space=vmem, size = 0x30000, scoped, tag = 'input window, operand 5, single buffered']
    #allocation9 [shape = 's32[1]{0}', space=sflag, size = 0x4, scoped, tag = 'scoped memory for tpu_custom_call.1']
    #allocation10 [shape = 'u8[4096]{0}', space=vmem, size = 0x1000, scoped, tag = 'output window, operand 0, single buffered']
    %12 = vsyncpa [#allocation3], 0
    %13 = vsyncpa [#allocation6], 0
    %14 = vsyncpa [#allocation9], 0
    %15 = vsyncpa [#allocation4], 0
    // Predicated region
    $region2: #{tpu_custom_call.1} parent=1 // pred_check
      _
    $region3: #{tpu_custom_call.1} parent=1 // pred_check_branch
      %17 = sbr.rel (0) target = $region5
    $region4: #{tpu_custom_call.1} parent=1 // pred_region
      %s19 = ssub.s32 768, 768
      %20 = vsyncadd [#allocation3], %s19
      %s22 = sshll.u32 [#allocation2], 4
      %s23 = int_to_ptr.vmem [resolvable:$true] %s22
      %25 = dma.hbm_to_vmem [thread:$0]  %s0, 768, %s23, [#allocation3]
    $region5: #{tpu_custom_call.1} parent=1 // pred_fallthru
      _
    // Predicated region
    $region6: #{tpu_custom_call.1} parent=1 // pred_check
      _
    $region7: #{tpu_custom_call.1} parent=1 // pred_check_branch
      %27 = sbr.rel (0) target = $region9
    $region8: #{tpu_custom_call.1} parent=1 // pred_region
      %s29 = ssub.s32 96, 96
      %30 = vsyncadd [#allocation6], %s29
      %s32 = sshll.u32 [#allocation5], 4
      %s33 = int_to_ptr.vmem [resolvable:$true] %s32
      %35 = dma.hbm_to_vmem [thread:$0]  %s1, 96, %s33, [#allocation6]
    $region9: #{tpu_custom_call.1} parent=1 // pred_fallthru
      _
    // Predicated region
    $region10: #{tpu_custom_call.1} parent=1 // pred_check
      _
    $region11: #{tpu_custom_call.1} parent=1 // pred_check_branch
      %37 = sbr.rel (0) target = $region13
    $region12: #{tpu_custom_call.1} parent=1 // pred_region
      _
    $region13: #{tpu_custom_call.1} parent=1 // pred_fallthru
      _
    // Predicated region
    $region14: #{tpu_custom_call.1} parent=1 // pred_check
      _
    $region15: #{tpu_custom_call.1} parent=1 // pred_check_branch
      %39 = sbr.rel (0) target = $region17
    $region16: #{tpu_custom_call.1} parent=1 // pred_region
      %s41 = ssub.s32 96, 96
      %42 = vsyncadd [#allocation6], %s41
      %s44 = sshll.u32 [#allocation7], 4
      %s45 = int_to_ptr.vmem [resolvable:$true] %s44
      %47 = dma.hbm_to_vmem [thread:$0]  %s3, 96, %s45, [#allocation6]
    $region17: #{tpu_custom_call.1} parent=1 // pred_fallthru
      _
    // Predicated region
    $region18: #{tpu_custom_call.1} parent=1 // pred_check
      _
    $region19: #{tpu_custom_call.1} parent=1 // pred_check_branch
      %49 = sbr.rel (0) target = $region21
    $region20: #{tpu_custom_call.1} parent=1 // pred_region
      _
    $region21: #{tpu_custom_call.1} parent=1 // pred_fallthru
      _
    // Predicated region
    $region22: #{tpu_custom_call.1} parent=1 // pred_check
      _
    $region23: #{tpu_custom_call.1} parent=1 // pred_check_branch
      %51 = sbr.rel (0) target = $region25
    $region24: #{tpu_custom_call.1} parent=1 // pred_region
      %s53 = ssub.s32 6144, 6144
      %54 = vsyncadd [#allocation9], %s53
      %s55 = sshll.u32 [#allocation8], 4
      %s56 = int_to_ptr.vmem [resolvable:$true] %s55
      %61 = dma.hbm_to_vmem [thread:$0]  %s5, 6144, %s56, [#allocation9], 64, 64, 4
    $region25: #{tpu_custom_call.1} parent=1 // pred_fallthru
      _
    // Predicated region
    $region26: #{tpu_custom_call.1} parent=1 // pred_check
      _
    $region27: #{tpu_custom_call.1} parent=1 // pred_check_branch
      %63 = sbr.rel (0) target = $region29
    $region28: #{tpu_custom_call.1} parent=1 // pred_region
      _
    $region29: #{tpu_custom_call.1} parent=1 // pred_fallthru
      _
    // Predicated region
    $region30: #{tpu_custom_call.1} parent=1 // pred_check
      _
    $region31: #{tpu_custom_call.1} parent=1 // pred_check_branch
      %65 = sbr.rel (0) target = $region33
    $region32: #{tpu_custom_call.1} parent=1 // pred_region
      %66 = dma.done [#allocation3], 768
    $region33: #{tpu_custom_call.1} parent=1 // pred_fallthru
      _
    // Predicated region
    $region34: #{tpu_custom_call.1} parent=1 // pred_check
      _
    $region35: #{tpu_custom_call.1} parent=1 // pred_check_branch
      %68 = sbr.rel (0) target = $region37
    $region36: #{tpu_custom_call.1} parent=1 // pred_region
      %69 = dma.done [#allocation6], 96
    $region37: #{tpu_custom_call.1} parent=1 // pred_fallthru
      _
    // Predicated region
    $region38: #{tpu_custom_call.1} parent=1 // pred_check
      _
    $region39: #{tpu_custom_call.1} parent=1 // pred_check_branch
      %71 = sbr.rel (0) target = $region41
    $region40: #{tpu_custom_call.1} parent=1 // pred_region
      %72 = dma.done [#allocation6], 96
    $region41: #{tpu_custom_call.1} parent=1 // pred_fallthru
      _
    // Predicated region
    $region42: #{tpu_custom_call.1} parent=1 // pred_check
      _
    $region43: #{tpu_custom_call.1} parent=1 // pred_check_branch
      %74 = sbr.rel (0) target = $region45
    $region44: #{tpu_custom_call.1} parent=1 // pred_region
      %75 = dma.done [#allocation9], 6144
    $region45: #{tpu_custom_call.1} parent=1 // pred_fallthru
      _
    %v77 = vld [vmem:[#allocation5] sm:$0x3f]
    %v78 = vtanh.pop %v77
    %v79 = vmul.f32 %v78, 0.49999997
    %v80 = vadd.f32 %v79, 0.5
    %v81 = vld [vmem:[%s2] sm:$0x3f]
    %v82 = vtanh.pop %v81
    %v83 = vmul.f32 %v82, 0.49999997
    %v84 = vadd.f32 %v83, 0.5
    %v85 = vld [vmem:[#allocation7] sm:$0x3f]
    %v86 = vsub.f32 %v84, %v85
    %v87 = vld [vmem:[%s4] sm:$0x3f]
    %v88 = vmul.f32 %v86, %v87
    %v89 = vsub.f32 1.0, %v80
    %v90 = vmul.f32 %v80, %v88
    %v91 = vld [vmem:[#allocation2] sm:$0xff]
    %v92 = vld [vmem:[#allocation2 + $0x8] sm:$0xff]
    %v93 = vld [vmem:[#allocation2 + $0x10] sm:$0xff]
    %v94 = vld [vmem:[#allocation2 + $0x18] sm:$0xff]
    %v95 = vld [vmem:[#allocation2 + $0x20] sm:$0xff]
    %v96 = vld [vmem:[#allocation2 + $0x28] sm:$0xff]
    %v98 = vlaneseq
    %v99 = vshrl.u32 %v98, 7
    %v100 = vsub.s32 0, %v99
    %v101 = vrot.slane %v89, %v100
    %v102 = vlaneseq
    %v103 = vshrl.u32 %v102, 7
    %v104 = vsub.s32 1, %v103
    %v105 = vrot.slane %v89, %v104
    %v106 = vlaneseq
    %v107 = vshrl.u32 %v106, 7
    %v108 = vsub.s32 2, %v107
    %v109 = vrot.slane %v89, %v108
    %v110 = vlaneseq
    %v111 = vshrl.u32 %v110, 7
    %v112 = vsub.s32 3, %v111
    %v113 = vrot.slane %v89, %v112
    %v114 = vlaneseq
    %v115 = vshrl.u32 %v114, 7
    %v116 = vsub.s32 4, %v115
    %v117 = vrot.slane %v89, %v116
    %v118 = vlaneseq
    %v119 = vshrl.u32 %v118, 7
    %v120 = vsub.s32 5, %v119
    %v121 = vrot.slane %v89, %v120
    %v128 = vmul.f32 %v91, %v101
    %v129 = vmul.f32 %v92, %v105
    %v130 = vmul.f32 %v93, %v109
    %v131 = vmul.f32 %v94, %v113
    %v132 = vmul.f32 %v95, %v117
    %v133 = vmul.f32 %v96, %v121
    %v135 = vlaneseq
    %v136 = vshrl.u32 %v135, 7
    %v137 = vsub.s32 0, %v136
    %v138 = vrot.slane %v90, %v137
    %v139 = vlaneseq
    %v140 = vshrl.u32 %v139, 7
    %v141 = vsub.s32 1, %v140
    %v142 = vrot.slane %v90, %v141
    %v143 = vlaneseq
    %v144 = vshrl.u32 %v143, 7
    %v145 = vsub.s32 2, %v144
    %v146 = vrot.slane %v90, %v145
    %v147 = vlaneseq
    %v148 = vshrl.u32 %v147, 7
    %v149 = vsub.s32 3, %v148
    %v150 = vrot.slane %v90, %v149
    %v151 = vlaneseq
    %v152 = vshrl.u32 %v151, 7
    %v153 = vsub.s32 4, %v152
    %v154 = vrot.slane %v90, %v153
    %v155 = vlaneseq
    %v156 = vshrl.u32 %v155, 7
    %v157 = vsub.s32 5, %v156
    %v158 = vrot.slane %v90, %v157
    %v165 = vadd.f32 %v128, %v138
    %v166 = vadd.f32 %v129, %v142
    %v167 = vadd.f32 %v130, %v146
    %v168 = vadd.f32 %v131, %v150
    %v169 = vadd.f32 %v132, %v154
    %v170 = vadd.f32 %v133, %v158
    %v171 = vpack.c.bf16 %v165, %v165
    %v172 = vpack.c.bf16 %v166, %v166
    %v173 = vpack.c.bf16 %v167, %v167
    %v174 = vpack.c.bf16 %v168, %v168
    %v175 = vpack.c.bf16 %v169, %v169
    %v176 = vpack.c.bf16 %v170, %v170
    %v177 = vld [vmem:[#allocation8] sm:$0xf]
    %v178 = vld [vmem:[#allocation8 + $0x4] sm:$0xf]
    %v179 = vld [vmem:[#allocation8 + $0x8] sm:$0xf]
    %v180 = vld [vmem:[#allocation8 + $0xc] sm:$0xf]
    %v181 = vld [vmem:[#allocation8 + $0x10] sm:$0xf]
    %v182 = vld [vmem:[#allocation8 + $0x14] sm:$0xf]
    %v183 = vld [vmem:[#allocation8 + $0x18] sm:$0xf]
    %v184 = vld [vmem:[#allocation8 + $0x1c] sm:$0xf]
    %v185 = vld [vmem:[#allocation8 + $0x20] sm:$0xf]
    %v186 = vld [vmem:[#allocation8 + $0x24] sm:$0xf]
    %v187 = vld [vmem:[#allocation8 + $0x28] sm:$0xf]
    %v188 = vld [vmem:[#allocation8 + $0x2c] sm:$0xf]
    %v189 = vld [vmem:[#allocation8 + $0x30] sm:$0xf]
    %v190 = vld [vmem:[#allocation8 + $0x34] sm:$0xf]
    %v191 = vld [vmem:[#allocation8 + $0x38] sm:$0xf]
    %v192 = vld [vmem:[#allocation8 + $0x3c] sm:$0xf]
    %v193 = vld [vmem:[#allocation8 + $0x40] sm:$0xf]
    %v194 = vld [vmem:[#allocation8 + $0x44] sm:$0xf]
    %v195 = vld [vmem:[#allocation8 + $0x48] sm:$0xf]
    %v196 = vld [vmem:[#allocation8 + $0x4c] sm:$0xf]
    %v197 = vld [vmem:[#allocation8 + $0x50] sm:$0xf]
    %v198 = vld [vmem:[#allocation8 + $0x54] sm:$0xf]
    %v199 = vld [vmem:[#allocation8 + $0x58] sm:$0xf]
    %v200 = vld [vmem:[#allocation8 + $0x5c] sm:$0xf]
    %v201 = vld [vmem:[#allocation8 + $0x60] sm:$0xf]
    %v202 = vld [vmem:[#allocation8 + $0x64] sm:$0xf]
    %v203 = vld [vmem:[#allocation8 + $0x68] sm:$0xf]
    %v204 = vld [vmem:[#allocation8 + $0x6c] sm:$0xf]
    %v205 = vld [vmem:[#allocation8 + $0x70] sm:$0xf]
    %v206 = vld [vmem:[#allocation8 + $0x74] sm:$0xf]
    %v207 = vld [vmem:[#allocation8 + $0x78] sm:$0xf]
    %v208 = vld [vmem:[#allocation8 + $0x7c] sm:$0xf]
    %v209 = vld [vmem:[#allocation8 + $0x80] sm:$0xf]
    %v210 = vld [vmem:[#allocation8 + $0x84] sm:$0xf]
    %v211 = vld [vmem:[#allocation8 + $0x88] sm:$0xf]
    %v212 = vld [vmem:[#allocation8 + $0x8c] sm:$0xf]
    %v213 = vld [vmem:[#allocation8 + $0x90] sm:$0xf]
    %v214 = vld [vmem:[#allocation8 + $0x94] sm:$0xf]
    %v215 = vld [vmem:[#allocation8 + $0x98] sm:$0xf]
    %v216 = vld [vmem:[#allocation8 + $0x9c] sm:$0xf]
    %v217 = vld [vmem:[#allocation8 + $0xa0] sm:$0xf]
    %v218 = vld [vmem:[#allocation8 + $0xa4] sm:$0xf]
    %v219 = vld [vmem:[#allocation8 + $0xa8] sm:$0xf]
    %v220 = vld [vmem:[#allocation8 + $0xac] sm:$0xf]
    %v221 = vld [vmem:[#allocation8 + $0xb0] sm:$0xf]
    %v222 = vld [vmem:[#allocation8 + $0xb4] sm:$0xf]
    %v223 = vld [vmem:[#allocation8 + $0xb8] sm:$0xf]
    %v224 = vld [vmem:[#allocation8 + $0xbc] sm:$0xf]
    %v225 = vld [vmem:[#allocation8 + $0xc0] sm:$0xf]
    %v226 = vld [vmem:[#allocation8 + $0xc4] sm:$0xf]
    %v227 = vld [vmem:[#allocation8 + $0xc8] sm:$0xf]
    %v228 = vld [vmem:[#allocation8 + $0xcc] sm:$0xf]
    %v229 = vld [vmem:[#allocation8 + $0xd0] sm:$0xf]
    %v230 = vld [vmem:[#allocation8 + $0xd4] sm:$0xf]
    %v231 = vld [vmem:[#allocation8 + $0xd8] sm:$0xf]
    %v232 = vld [vmem:[#allocation8 + $0xdc] sm:$0xf]
    %v233 = vld [vmem:[#allocation8 + $0xe0] sm:$0xf]
    %v234 = vld [vmem:[#allocation8 + $0xe4] sm:$0xf]
    %v235 = vld [vmem:[#allocation8 + $0xe8] sm:$0xf]
    %v236 = vld [vmem:[#allocation8 + $0xec] sm:$0xf]
    %v237 = vld [vmem:[#allocation8 + $0xf0] sm:$0xf]
    %v238 = vld [vmem:[#allocation8 + $0xf4] sm:$0xf]
    %v239 = vld [vmem:[#allocation8 + $0xf8] sm:$0xf]
    %v240 = vld [vmem:[#allocation8 + $0xfc] sm:$0xf]
    %v241 = vld [vmem:[#allocation8 + $0x100] sm:$0xf]
    %v242 = vld [vmem:[#allocation8 + $0x104] sm:$0xf]
    %v243 = vld [vmem:[#allocation8 + $0x108] sm:$0xf]
    %v244 = vld [vmem:[#allocation8 + $0x10c] sm:$0xf]
    %v245 = vld [vmem:[#allocation8 + $0x110] sm:$0xf]
    %v246 = vld [vmem:[#allocation8 + $0x114] sm:$0xf]
    %v247 = vld [vmem:[#allocation8 + $0x118] sm:$0xf]
    %v248 = vld [vmem:[#allocation8 + $0x11c] sm:$0xf]
    %v249 = vld [vmem:[#allocation8 + $0x120] sm:$0xf]
    %v250 = vld [vmem:[#allocation8 + $0x124] sm:$0xf]
    %v251 = vld [vmem:[#allocation8 + $0x128] sm:$0xf]
    %v252 = vld [vmem:[#allocation8 + $0x12c] sm:$0xf]
    %v253 = vld [vmem:[#allocation8 + $0x130] sm:$0xf]
    %v254 = vld [vmem:[#allocation8 + $0x134] sm:$0xf]
    %v255 = vld [vmem:[#allocation8 + $0x138] sm:$0xf]
    %v256 = vld [vmem:[#allocation8 + $0x13c] sm:$0xf]
    %v257 = vld [vmem:[#allocation8 + $0x140] sm:$0xf]
    %v258 = vld [vmem:[#allocation8 + $0x144] sm:$0xf]
    %v259 = vld [vmem:[#allocation8 + $0x148] sm:$0xf]
    %v260 = vld [vmem:[#allocation8 + $0x14c] sm:$0xf]
    %v261 = vld [vmem:[#allocation8 + $0x150] sm:$0xf]
    %v262 = vld [vmem:[#allocation8 + $0x154] sm:$0xf]
    %v263 = vld [vmem:[#allocation8 + $0x158] sm:$0xf]
    %v264 = vld [vmem:[#allocation8 + $0x15c] sm:$0xf]
    %v265 = vld [vmem:[#allocation8 + $0x160] sm:$0xf]
    %v266 = vld [vmem:[#allocation8 + $0x164] sm:$0xf]
    %v267 = vld [vmem:[#allocation8 + $0x168] sm:$0xf]
    %v268 = vld [vmem:[#allocation8 + $0x16c] sm:$0xf]
    %v269 = vld [vmem:[#allocation8 + $0x170] sm:$0xf]
    %v270 = vld [vmem:[#allocation8 + $0x174] sm:$0xf]
    %v271 = vld [vmem:[#allocation8 + $0x178] sm:$0xf]
    %v272 = vld [vmem:[#allocation8 + $0x17c] sm:$0xf]
    %v273 = vld [vmem:[%s6] sm:$0x1]
    %v275 = vlaneseq
    %v276 = vshrl.u32 %v275, 7
    %v277 = vsub.s32 0, %v276
    %v278 = vrot.slane %v273, %v277
    %v376 = vunpack.c.l.b16 %v177
    %v377 = vunpack.c.l.b16 %v178
    %v378 = vunpack.c.l.b16 %v179
    %v379 = vunpack.c.l.b16 %v180
    %v380 = vunpack.c.l.b16 %v181
    %v381 = vunpack.c.l.b16 %v182
    %v382 = vunpack.c.l.b16 %v183
    %v383 = vunpack.c.l.b16 %v184
    %v384 = vunpack.c.l.b16 %v185
    %v385 = vunpack.c.l.b16 %v186
    %v386 = vunpack.c.l.b16 %v187
    %v387 = vunpack.c.l.b16 %v188
    %v388 = vunpack.c.l.b16 %v189
    %v389 = vunpack.c.l.b16 %v190
    %v390 = vunpack.c.l.b16 %v191
    %v391 = vunpack.c.l.b16 %v192
    %v392 = vunpack.c.l.b16 %v193
    %v393 = vunpack.c.l.b16 %v194
    %v394 = vunpack.c.l.b16 %v195
    %v395 = vunpack.c.l.b16 %v196
    %v396 = vunpack.c.l.b16 %v197
    %v397 = vunpack.c.l.b16 %v198
    %v398 = vunpack.c.l.b16 %v199
    %v399 = vunpack.c.l.b16 %v200
    %v400 = vunpack.c.l.b16 %v201
    %v401 = vunpack.c.l.b16 %v202
    %v402 = vunpack.c.l.b16 %v203
    %v403 = vunpack.c.l.b16 %v204
    %v404 = vunpack.c.l.b16 %v205
    %v405 = vunpack.c.l.b16 %v206
    %v406 = vunpack.c.l.b16 %v207
    %v407 = vunpack.c.l.b16 %v208
    %v408 = vunpack.c.l.b16 %v209
    %v409 = vunpack.c.l.b16 %v210
    %v410 = vunpack.c.l.b16 %v211
    %v411 = vunpack.c.l.b16 %v212
    %v412 = vunpack.c.l.b16 %v213
    %v413 = vunpack.c.l.b16 %v214
    %v414 = vunpack.c.l.b16 %v215
    %v415 = vunpack.c.l.b16 %v216
    %v416 = vunpack.c.l.b16 %v217
    %v417 = vunpack.c.l.b16 %v218
    %v418 = vunpack.c.l.b16 %v219
    %v419 = vunpack.c.l.b16 %v220
    %v420 = vunpack.c.l.b16 %v221
    %v421 = vunpack.c.l.b16 %v222
    %v422 = vunpack.c.l.b16 %v223
    %v423 = vunpack.c.l.b16 %v224
    %v424 = vunpack.c.l.b16 %v225
    %v425 = vunpack.c.l.b16 %v226
    %v426 = vunpack.c.l.b16 %v227
    %v427 = vunpack.c.l.b16 %v228
    %v428 = vunpack.c.l.b16 %v229
    %v429 = vunpack.c.l.b16 %v230
    %v430 = vunpack.c.l.b16 %v231
    %v431 = vunpack.c.l.b16 %v232
    %v432 = vunpack.c.l.b16 %v233
    %v433 = vunpack.c.l.b16 %v234
    %v434 = vunpack.c.l.b16 %v235
    %v435 = vunpack.c.l.b16 %v236
    %v436 = vunpack.c.l.b16 %v237
    %v437 = vunpack.c.l.b16 %v238
    %v438 = vunpack.c.l.b16 %v239
    %v439 = vunpack.c.l.b16 %v240
    %v440 = vunpack.c.l.b16 %v241
    %v441 = vunpack.c.l.b16 %v242
    %v442 = vunpack.c.l.b16 %v243
    %v443 = vunpack.c.l.b16 %v244
    %v444 = vunpack.c.l.b16 %v245
    %v445 = vunpack.c.l.b16 %v246
    %v446 = vunpack.c.l.b16 %v247
    %v447 = vunpack.c.l.b16 %v248
    %v448 = vunpack.c.l.b16 %v249
    %v449 = vunpack.c.l.b16 %v250
    %v450 = vunpack.c.l.b16 %v251
    %v451 = vunpack.c.l.b16 %v252
    %v452 = vunpack.c.l.b16 %v253
    %v453 = vunpack.c.l.b16 %v254
    %v454 = vunpack.c.l.b16 %v255
    %v455 = vunpack.c.l.b16 %v256
    %v456 = vunpack.c.l.b16 %v257
    %v457 = vunpack.c.l.b16 %v258
    %v458 = vunpack.c.l.b16 %v259
    %v459 = vunpack.c.l.b16 %v260
    %v460 = vunpack.c.l.b16 %v261
    %v461 = vunpack.c.l.b16 %v262
    %v462 = vunpack.c.l.b16 %v263
    %v463 = vunpack.c.l.b16 %v264
    %v464 = vunpack.c.l.b16 %v265
    %v465 = vunpack.c.l.b16 %v266
    %v466 = vunpack.c.l.b16 %v267
    %v467 = vunpack.c.l.b16 %v268
    %v468 = vunpack.c.l.b16 %v269
    %v469 = vunpack.c.l.b16 %v270
    %v470 = vunpack.c.l.b16 %v271
    %v471 = vunpack.c.l.b16 %v272
    %v472 = vpack.c.b16 %v377, %v376
    %v473 = vpack.c.b16 %v379, %v378
    %v474 = vpack.c.b16 %v381, %v380
    %v475 = vpack.c.b16 %v383, %v382
    %v476 = vpack.c.b16 %v385, %v384
    %v477 = vpack.c.b16 %v387, %v386
    %v478 = vpack.c.b16 %v389, %v388
    %v479 = vpack.c.b16 %v391, %v390
    %v480 = vpack.c.b16 %v393, %v392
    %v481 = vpack.c.b16 %v395, %v394
    %v482 = vpack.c.b16 %v397, %v396
    %v483 = vpack.c.b16 %v399, %v398
    %v484 = vpack.c.b16 %v401, %v400
    %v485 = vpack.c.b16 %v403, %v402
    %v486 = vpack.c.b16 %v405, %v404
    %v487 = vpack.c.b16 %v407, %v406
    %v488 = vpack.c.b16 %v409, %v408
    %v489 = vpack.c.b16 %v411, %v410
    %v490 = vpack.c.b16 %v413, %v412
    %v491 = vpack.c.b16 %v415, %v414
    %v492 = vpack.c.b16 %v417, %v416
    %v493 = vpack.c.b16 %v419, %v418
    %v494 = vpack.c.b16 %v421, %v420
    %v495 = vpack.c.b16 %v423, %v422
    %v496 = vpack.c.b16 %v425, %v424
    %v497 = vpack.c.b16 %v427, %v426
    %v498 = vpack.c.b16 %v429, %v428
    %v499 = vpack.c.b16 %v431, %v430
    %v500 = vpack.c.b16 %v433, %v432
    %v501 = vpack.c.b16 %v435, %v434
    %v502 = vpack.c.b16 %v437, %v436
    %v503 = vpack.c.b16 %v439, %v438
    %v504 = vpack.c.b16 %v441, %v440
    %v505 = vpack.c.b16 %v443, %v442
    %v506 = vpack.c.b16 %v445, %v444
    %v507 = vpack.c.b16 %v447, %v446
    %v508 = vpack.c.b16 %v449, %v448
    %v509 = vpack.c.b16 %v451, %v450
    %v510 = vpack.c.b16 %v453, %v452
    %v511 = vpack.c.b16 %v455, %v454
    %v512 = vpack.c.b16 %v457, %v456
    %v513 = vpack.c.b16 %v459, %v458
    %v514 = vpack.c.b16 %v461, %v460
    %v515 = vpack.c.b16 %v463, %v462
    %v516 = vpack.c.b16 %v465, %v464
    %v517 = vpack.c.b16 %v467, %v466
    %v518 = vpack.c.b16 %v469, %v468
    %v519 = vpack.c.b16 %v471, %v470
    %568 = vmatprep.subr.bf16.mxu0 0
    %569 = vmatpush1.bf16.msra.mxu0 %v472
    %570 = vmatprep.subr.bf16.mxu0 0
    %571 = vmatpush1.bf16.msra.mxu0 %v473
    %572 = vmatprep.subr.bf16.mxu0 0
    %573 = vmatpush1.bf16.msra.mxu0 %v474
    %574 = vmatprep.subr.bf16.mxu0 0
    %575 = vmatpush1.bf16.msra.mxu0 %v475
    %576 = vmatprep.subr.bf16.mxu0 0
    %577 = vmatpush1.bf16.msra.mxu0 %v476
    %578 = vmatprep.subr.bf16.mxu0 0
    %579 = vmatpush1.bf16.msra.mxu0 %v477
    %580 = vmatprep.subr.bf16.mxu0 0
    %581 = vmatpush1.bf16.msra.mxu0 %v478
    %582 = vmatprep.subr.bf16.mxu0 0
    %583 = vmatpush1.bf16.msra.mxu0 %v479
    %584 = vmatprep.subr.bf16.mxu0 0
    %585 = vmatpush1.bf16.msra.mxu0 %v480
    %586 = vmatprep.subr.bf16.mxu0 0
    %587 = vmatpush1.bf16.msra.mxu0 %v481
    %588 = vmatprep.subr.bf16.mxu0 0
    %589 = vmatpush1.bf16.msra.mxu0 %v482
    %590 = vmatprep.subr.bf16.mxu0 0
    %591 = vmatpush1.bf16.msra.mxu0 %v483
    %592 = vmatprep.subr.bf16.mxu0 0
    %593 = vmatpush1.bf16.msra.mxu0 %v484
    %594 = vmatprep.subr.bf16.mxu0 0
    %595 = vmatpush1.bf16.msra.mxu0 %v485
    %596 = vmatprep.subr.bf16.mxu0 0
    %597 = vmatpush1.bf16.msra.mxu0 %v486
    %598 = vmatprep.subr.bf16.mxu0 0
    %599 = vmatpush1.bf16.msra.mxu0 %v487
    %600 = vmatprep.mubr.bf16.mxu0 %v172
    %601 = vmatmul.mubr.bf16.gmra.mrb[0].mxu0 %v171
    %v602 = vpop.f32.mrb[0].mxu0
    %v603 = vadd.f32 %v278, %v602
    %v604 = vpop.f32.mrb[0].mxu0
    %v605 = vpop.f32.mrb[0].mxu0
    %v606 = vpop.f32.mrb[0].mxu0
    %607 = vdwg.mxu0
    %608 = vmatprep.subr.bf16.mxu0 0
    %609 = vmatpush1.bf16.msra.mxu0 %v488
    %610 = vmatprep.subr.bf16.mxu0 0
    %611 = vmatpush1.bf16.msra.mxu0 %v489
    %612 = vmatprep.subr.bf16.mxu0 0
    %613 = vmatpush1.bf16.msra.mxu0 %v490
    %614 = vmatprep.subr.bf16.mxu0 0
    %615 = vmatpush1.bf16.msra.mxu0 %v491
    %616 = vmatprep.subr.bf16.mxu0 0
    %617 = vmatpush1.bf16.msra.mxu0 %v492
    %618 = vmatprep.subr.bf16.mxu0 0
    %619 = vmatpush1.bf16.msra.mxu0 %v493
    %620 = vmatprep.subr.bf16.mxu0 0
    %621 = vmatpush1.bf16.msra.mxu0 %v494
    %622 = vmatprep.subr.bf16.mxu0 0
    %623 = vmatpush1.bf16.msra.mxu0 %v495
    %624 = vmatprep.subr.bf16.mxu0 0
    %625 = vmatpush1.bf16.msra.mxu0 %v496
    %626 = vmatprep.subr.bf16.mxu0 0
    %627 = vmatpush1.bf16.msra.mxu0 %v497
    %628 = vmatprep.subr.bf16.mxu0 0
    %629 = vmatpush1.bf16.msra.mxu0 %v498
    %630 = vmatprep.subr.bf16.mxu0 0
    %631 = vmatpush1.bf16.msra.mxu0 %v499
    %632 = vmatprep.subr.bf16.mxu0 0
    %633 = vmatpush1.bf16.msra.mxu0 %v500
    %634 = vmatprep.subr.bf16.mxu0 0
    %635 = vmatpush1.bf16.msra.mxu0 %v501
    %636 = vmatprep.subr.bf16.mxu0 0
    %637 = vmatpush1.bf16.msra.mxu0 %v502
    %638 = vmatprep.subr.bf16.mxu0 0
    %639 = vmatpush1.bf16.msra.mxu0 %v503
    %640 = vmatprep.mubr.bf16.mxu0 %v174
    %641 = vmatmul.mubr.bf16.gmra.mrb[0].mxu0 %v173
    %v642 = vpop.f32.mrb[0].mxu0
    %v643 = vadd.f32 %v603, %v642
    %v644 = vpop.f32.mrb[0].mxu0
    %v645 = vpop.f32.mrb[0].mxu0
    %v646 = vpop.f32.mrb[0].mxu0
    %647 = vdwg.mxu0
    %648 = vmatprep.subr.bf16.mxu0 0
    %649 = vmatpush1.bf16.msra.mxu0 %v504
    %650 = vmatprep.subr.bf16.mxu0 0
    %651 = vmatpush1.bf16.msra.mxu0 %v505
    %652 = vmatprep.subr.bf16.mxu0 0
    %653 = vmatpush1.bf16.msra.mxu0 %v506
    %654 = vmatprep.subr.bf16.mxu0 0
    %655 = vmatpush1.bf16.msra.mxu0 %v507
    %656 = vmatprep.subr.bf16.mxu0 0
    %657 = vmatpush1.bf16.msra.mxu0 %v508
    %658 = vmatprep.subr.bf16.mxu0 0
    %659 = vmatpush1.bf16.msra.mxu0 %v509
    %660 = vmatprep.subr.bf16.mxu0 0
    %661 = vmatpush1.bf16.msra.mxu0 %v510
    %662 = vmatprep.subr.bf16.mxu0 0
    %663 = vmatpush1.bf16.msra.mxu0 %v511
    %664 = vmatprep.subr.bf16.mxu0 0
    %665 = vmatpush1.bf16.msra.mxu0 %v512
    %666 = vmatprep.subr.bf16.mxu0 0
    %667 = vmatpush1.bf16.msra.mxu0 %v513
    %668 = vmatprep.subr.bf16.mxu0 0
    %669 = vmatpush1.bf16.msra.mxu0 %v514
    %670 = vmatprep.subr.bf16.mxu0 0
    %671 = vmatpush1.bf16.msra.mxu0 %v515
    %672 = vmatprep.subr.bf16.mxu0 0
    %673 = vmatpush1.bf16.msra.mxu0 %v516
    %674 = vmatprep.subr.bf16.mxu0 0
    %675 = vmatpush1.bf16.msra.mxu0 %v517
    %676 = vmatprep.subr.bf16.mxu0 0
    %677 = vmatpush1.bf16.msra.mxu0 %v518
    %678 = vmatprep.subr.bf16.mxu0 0
    %679 = vmatpush1.bf16.msra.mxu0 %v519
    %680 = vmatprep.mubr.bf16.mxu0 %v176
    %681 = vmatmul.mubr.bf16.gmra.mrb[0].mxu0 %v175
    %v682 = vpop.f32.mrb[0].mxu0
    %v683 = vadd.f32 %v643, %v682
    %v684 = vpop.f32.mrb[0].mxu0
    %v685 = vpop.f32.mrb[0].mxu0
    %v686 = vpop.f32.mrb[0].mxu0
    %687 = vdwg.mxu0
    %688 = vst [vmem:[#allocation10] sm:$0xff] %v683
    // Predicated region
    $region46: #{tpu_custom_call.1} parent=1 // pred_check
      _
    $region47: #{tpu_custom_call.1} parent=1 // pred_check_branch
      %690 = sbr.rel (0) target = $region49
    $region48: #{tpu_custom_call.1} parent=1 // pred_region
      %s692 = ssub.s32 128, 128
      %693 = vsyncadd [#allocation4], %s692
      %s695 = sshll.u32 [#allocation10], 4
      %s696 = int_to_ptr.vmem [resolvable:$true] %s695
      %698 = dma.vmem_to_hbm [thread:$0]  %s696, 128, %s7, [#allocation4]
    $region49: #{tpu_custom_call.1} parent=1 // pred_fallthru
      _
    // Predicated region
    $region50: #{tpu_custom_call.1} parent=1 // pred_check
      _
    $region51: #{tpu_custom_call.1} parent=1 // pred_check_branch
      %700 = sbr.rel (0) target = $region53
    $region52: #{tpu_custom_call.1} parent=1 // pred_region
      %701 = dma.done [#allocation4], 128
    $region53: #{tpu_custom_call.1} parent=1 // pred_fallthru
      _
    %702 = vsyncpa [#allocation3], 1
    %703 = vsyncpa [#allocation6], 1
    %704 = vsyncpa [#allocation9], 1
    %705 = vsyncpa [#allocation4], 1

</llo_original>
